<compile_context>
chip_gen: v7x
topology: tpu7x:2x2x1
jax: 0.10.0
libtpu: 0.0.40
codegen_flags: <defaults>
</compile_context>

<pallas_src>
import functools

import jax
import jax.numpy as jnp
from jax import lax
from jax.experimental import pallas as pl
from jax.experimental.pallas import tpu as pltpu


def _round_up(x, m):
    return ((x + m - 1) // m) * m


def _bert_output_kernel(x_ref, w_ref, b_ref, res_ref, g_ref, beta_ref,
                        o_ref, acc_ref, *, eps):
    k = pl.program_id(1)

    @pl.when(k == 0)
    def _():
        acc_ref[...] = jnp.zeros_like(acc_ref)

    # MXU matmul with f32 accumulation into the VMEM scratch.
    acc_ref[...] += jnp.dot(x_ref[...], w_ref[...],
                            preferred_element_type=jnp.float32)

    @pl.when(k == pl.num_programs(1) - 1)
    def _():
        # Epilogue: bias + residual + TF-style LayerNorm, all in f32.
        h = acc_ref[...] + b_ref[...].astype(jnp.float32)
        h = h + res_ref[...].astype(jnp.float32)

        u = jnp.mean(h, axis=-1, keepdims=True)          # XLU reduce
        xc = h - u
        s = jnp.mean(xc * xc, axis=-1, keepdims=True)
        inv = lax.rsqrt(s + eps)                         # EUP rsqrt (free slot)
        y = xc * inv

        g = g_ref[...].astype(jnp.float32)
        bt = beta_ref[...].astype(jnp.float32)
        o_ref[...] = (g * y + bt).astype(o_ref.dtype)


def _select_tiles(rows, k_dim, n_hidden, in_itemsize, out_itemsize,
                  row_tile, k_tile, vmem_budget_bytes):
    """Pick (tm, tk) that respect (8,128) alignment and a VMEM budget."""
    tm = _round_up(min(row_tile, _round_up(rows, 8)), 8)
    tk = _round_up(min(k_tile, _round_up(k_dim, 128)), 128)

    def estimate(tm, tk):
        x_b = 2 * tm * tk * in_itemsize            # double-buffered x tile
        w_b = 2 * tk * n_hidden * in_itemsize      # double-buffered w tile
        r_b = 2 * tm * n_hidden * in_itemsize      # residual tile
        o_b = 2 * tm * n_hidden * out_itemsize     # output tile
        acc_b = tm * n_hidden * 4                  # f32 accumulator scratch
        par_b = 6 * n_hidden * in_itemsize         # bias/gamma/beta (tiny)
        return x_b + w_b + r_b + o_b + acc_b + par_b

    # Shrink the K tile first (doesn't hurt the lane-dense output), then rows.
    while estimate(tm, tk) > vmem_budget_bytes and tk > 128:
        tk = max(128, tk // 2)
    while estimate(tm, tk) > vmem_budget_bytes and tm > 8:
        tm = max(8, _round_up(tm // 2, 8))
    return tm, tk, estimate(tm, tk)


def bert_output_forward(hidden_states, input_tensor, w, b, gamma, beta,
                        *, eps=1e-12, dropout_prob=0.0,
                        row_tile=512, k_tile=512,
                        vmem_budget_bytes=24 * 1024 * 1024):
    """Fused BertOutput forward.

    hidden_states: (..., intermediate)   activations from BertIntermediate
    input_tensor : (..., hidden)         residual input
    w            : (intermediate, hidden)  (= torch Linear weight transposed)
    b            : (hidden,)
    gamma, beta  : (hidden,)             LayerNorm parameters
    """
    # TODO(synk): training-mode dropout (hidden_dropout_prob > 0) is not applied
    # in-kernel; this implements eval-mode dropout (identity), matching
    # nn.Dropout in eval().
    del dropout_prob

    orig_shape = input_tensor.shape
    n_hidden = orig_shape[-1]
    k_dim = hidden_states.shape[-1]
    assert w.shape == (k_dim, n_hidden)

    out_dtype = hidden_states.dtype
    in_itemsize = jnp.dtype(hidden_states.dtype).itemsize
    out_itemsize = jnp.dtype(out_dtype).itemsize

    x2 = hidden_states.reshape(-1, k_dim)
    r2 = input_tensor.reshape(-1, n_hidden)
    rows = x2.shape[0]

    tm, tk, vmem_est = _select_tiles(rows, k_dim, n_hidden,
                                     in_itemsize, out_itemsize,
                                     row_tile, k_tile, vmem_budget_bytes)
    rows_p = _round_up(rows, tm)
    k_p = _round_up(k_dim, tk)

    if rows_p != rows:
        x2 = jnp.pad(x2, ((0, rows_p - rows), (0, 0)))
        r2 = jnp.pad(r2, ((0, rows_p - rows), (0, 0)))
    if k_p != k_dim:
        x2 = jnp.pad(x2, ((0, 0), (0, k_p - k_dim)))
        w = jnp.pad(w, ((0, k_p - k_dim), (0, 0)))

    b2 = b.reshape(1, n_hidden)
    g2 = gamma.reshape(1, n_hidden)
    beta2 = beta.reshape(1, n_hidden)

    grid = (rows_p // tm, k_p // tk)

    # Advisory cost hint for XLA's scheduler around the custom call.
    cost = pl.CostEstimate(
        flops=2 * rows_p * k_p * n_hidden + 8 * rows_p * n_hidden,
        transcendentals=rows_p,
        bytes_accessed=(x2.size * in_itemsize + w.size * in_itemsize
                        + r2.size * in_itemsize
                        + rows_p * n_hidden * out_itemsize),
    )

    # Scoped-VMEM limit with headroom; capped so it is valid on v7x (64 MiB).
    vmem_limit = min(max(2 * vmem_est, 32 * 1024 * 1024), 64 * 1024 * 1024)

    out = pl.pallas_call(
        functools.partial(_bert_output_kernel, eps=eps),
        out_shape=jax.ShapeDtypeStruct((rows_p, n_hidden), out_dtype),
        grid_spec=pltpu.PrefetchScalarGridSpec(
            num_scalar_prefetch=0,
            grid=grid,
            in_specs=[
                pl.BlockSpec((tm, tk), lambda i, k: (i, k)),        # x
                pl.BlockSpec((tk, n_hidden), lambda i, k: (k, 0)),  # w
                pl.BlockSpec((1, n_hidden), lambda i, k: (0, 0)),   # bias
                pl.BlockSpec((tm, n_hidden), lambda i, k: (i, 0)),  # residual
                pl.BlockSpec((1, n_hidden), lambda i, k: (0, 0)),   # gamma
                pl.BlockSpec((1, n_hidden), lambda i, k: (0, 0)),   # beta
            ],
            out_specs=pl.BlockSpec((tm, n_hidden), lambda i, k: (i, 0)),
            scratch_shapes=[pltpu.VMEM((tm, n_hidden), jnp.float32)],
        ),
        compiler_params=pltpu.CompilerParams(
            dimension_semantics=("parallel", "arbitrary"),
            vmem_limit_bytes=vmem_limit,
        ),
        cost_estimate=cost,
    )(x2, w, b2, r2, g2, beta2)

    if rows_p != rows:
        out = out[:rows]
    return out.reshape(orig_shape)


def _reference(hidden_states, input_tensor, w, b, gamma, beta, eps=1e-12):
    h = jnp.einsum("...k,kn->...n", hidden_states, w) + b
    h = h + input_tensor
    u = jnp.mean(h, axis=-1, keepdims=True)
    s = jnp.mean((h - u) ** 2, axis=-1, keepdims=True)
    return gamma * ((h - u) / jnp.sqrt(s + eps)) + beta


if __name__ == "__main__":
    key = jax.random.PRNGKey(0)
    k1, k2, k3, k4, k5, k6 = jax.random.split(key, 6)

    # --- test 1: single-block grid (hidden=32, intermediate=128) ---
    batch, seq, hidden, inter = 2, 8, 32, 128
    hs = jax.random.normal(k1, (batch, seq, inter), dtype=jnp.float32)
    res = jax.random.normal(k2, (batch, seq, hidden), dtype=jnp.float32)
    w = 0.05 * jax.random.normal(k3, (inter, hidden), dtype=jnp.float32)
    b = 0.1 * jax.random.normal(k4, (hidden,), dtype=jnp.float32)
    gamma = 1.0 + 0.1 * jax.random.normal(k5, (hidden,), dtype=jnp.float32)
    beta = 0.1 * jax.random.normal(k6, (hidden,), dtype=jnp.float32)

    out = bert_output_forward(hs, res, w, b, gamma, beta, eps=1e-12)
    out = jax.block_until_ready(out)
    ref = _reference(hs, res, w, b, gamma, beta, eps=1e-12)
    assert out.shape == ref.shape
    assert jnp.allclose(out, ref, atol=2e-2, rtol=2e-2), "test1 mismatch vs reference"

    # --- test 2: multi-step K reduction + row padding (lane-dense hidden=128) ---
    batch2, seq2, hidden2, inter2 = 2, 23, 128, 384   # rows=46 -> padded to 48
    hs2 = jax.random.normal(k1, (batch2, seq2, inter2), dtype=jnp.float32)
    res2 = jax.random.normal(k2, (batch2, seq2, hidden2), dtype=jnp.float32)
    w2 = 0.03 * jax.random.normal(k3, (inter2, hidden2), dtype=jnp.float32)
    b2 = 0.1 * jax.random.normal(k4, (hidden2,), dtype=jnp.float32)
    gamma2 = 1.0 + 0.1 * jax.random.normal(k5, (hidden2,), dtype=jnp.float32)
    beta2 = 0.1 * jax.random.normal(k6, (hidden2,), dtype=jnp.float32)

    out2 = bert_output_forward(hs2, res2, w2, b2, gamma2, beta2,
                               eps=1e-12, row_tile=16, k_tile=128)
    out2 = jax.block_until_ready(out2)
    ref2 = _reference(hs2, res2, w2, b2, gamma2, beta2, eps=1e-12)
    assert out2.shape == ref2.shape
    assert jnp.allclose(out2, ref2, atol=2e-2, rtol=2e-2), "test2 mismatch vs reference"

    # --- test 3: bf16 I/O path (MXU-native dtype), multi-k ---
    hs3 = hs2.astype(jnp.bfloat16)
    res3 = res2.astype(jnp.bfloat16)
    out3 = bert_output_forward(hs3, res3, w2.astype(jnp.bfloat16),
                               b2.astype(jnp.bfloat16),
                               gamma2.astype(jnp.bfloat16),
                               beta2.astype(jnp.bfloat16),
                               eps=1e-12, row_tile=16, k_tile=128)
    out3 = jax.block_until_ready(out3)
    assert out3.shape == ref2.shape
    assert jnp.allclose(out3.astype(jnp.float32), ref2, atol=1e-1, rtol=1e-1), \
        "test3 (bf16) mismatch vs reference"

    print("KERNEL_OK")
</pallas_src>

<mosaic_0001>
module attributes {stable_mosaic.version = 11 : i64} {
  func.func @_bert_output_kernel(%arg0: i32, %arg1: i32, %arg2: memref<16x128xf32, #tpu.memory_space<vmem>>, %arg3: memref<128x32xf32, #tpu.memory_space<vmem>>, %arg4: memref<1x32xf32, #tpu.memory_space<vmem>>, %arg5: memref<16x32xf32, #tpu.memory_space<vmem>>, %arg6: memref<1x32xf32, #tpu.memory_space<vmem>>, %arg7: memref<1x32xf32, #tpu.memory_space<vmem>>, %arg8: memref<16x32xf32, #tpu.memory_space<vmem>>, %arg9: memref<16x32xf32, #tpu.memory_space<vmem>>) attributes {dimension_semantics = [#tpu.dimension_semantics<parallel>, #tpu.dimension_semantics<arbitrary>], iteration_bounds = array<i64: 1, 1>, scalar_prefetch = 0 : i64, scratch_operands = 1 : i64, tpu.core_type = #tpu.core_type<tc>, window_params = [{transform_indices = @transform_0, window_bounds = array<i64: 16, 128>}, {transform_indices = @transform_1, window_bounds = array<i64: 128, 32>}, {pipeline_mode = #tpu.pipeline_mode<synchronous>, transform_indices = @transform_2, window_bounds = array<i64: 1, 32>}, {transform_indices = @transform_3, window_bounds = array<i64: 16, 32>}, {pipeline_mode = #tpu.pipeline_mode<synchronous>, transform_indices = @transform_4, window_bounds = array<i64: 1, 32>}, {pipeline_mode = #tpu.pipeline_mode<synchronous>, transform_indices = @transform_5, window_bounds = array<i64: 1, 32>}, {transform_indices = @transform_6, window_bounds = array<i64: 16, 32>}]} {
    %c0_i32 = arith.constant 0 : i32
    %0 = arith.cmpi eq, %arg1, %c0_i32 : i32
    %1 = arith.extui %0 : i1 to i32
    %c0_i32_0 = arith.constant 0 : i32
    %2 = arith.cmpi ne, %1, %c0_i32_0 : i32
    scf.if %2 {
      %cst_10 = arith.constant 0.000000e+00 : f32
      %12 = vector.broadcast %cst_10 : f32 to vector<16x32xf32>
      %c0_11 = arith.constant 0 : index
      %c0_12 = arith.constant 0 : index
      %13 = vector.load %arg9[%c0_11, %c0_12] : memref<16x32xf32, #tpu.memory_space<vmem>>, vector<16x32xf32>
      tpu.vector_store %arg9[%c0_11, %c0_12], %12 {strides = array<i32>} : memref<16x32xf32, #tpu.memory_space<vmem>>, vector<16x32xf32>,
    } else {
    }
    %c0 = arith.constant 0 : index
    %c0_1 = arith.constant 0 : index
    %3 = vector.load %arg9[%c0, %c0_1] : memref<16x32xf32, #tpu.memory_space<vmem>>, vector<16x32xf32>
    %c0_2 = arith.constant 0 : index
    %c0_3 = arith.constant 0 : index
    %4 = vector.load %arg2[%c0_2, %c0_3] : memref<16x128xf32, #tpu.memory_space<vmem>>, vector<16x128xf32>
    %c0_4 = arith.constant 0 : index
    %c0_5 = arith.constant 0 : index
    %5 = vector.load %arg3[%c0_4, %c0_5] : memref<128x32xf32, #tpu.memory_space<vmem>>, vector<128x32xf32>
    %cst = arith.constant dense<0.000000e+00> : vector<16x32xf32>
    %6 = tpu.matmul %4, %5, %cst {dimension_numbers = #tpu.dot_dimension_numbers<[1], [0], [0], [1], [0, 0, 1, 1], [], []>} : vector<16x128xf32>, vector<128x32xf32>, vector<16x32xf32> -> vector<16x32xf32>
    %7 = arith.addf %3, %6 : vector<16x32xf32>
    %c0_6 = arith.constant 0 : index
    %c0_7 = arith.constant 0 : index
    %8 = vector.load %arg9[%c0_6, %c0_7] : memref<16x32xf32, #tpu.memory_space<vmem>>, vector<16x32xf32>
    tpu.vector_store %arg9[%c0_6, %c0_7], %7 {strides = array<i32>} : memref<16x32xf32, #tpu.memory_space<vmem>>, vector<16x32xf32>,
    %c0_i32_8 = arith.constant 0 : i32
    %9 = arith.cmpi eq, %arg1, %c0_i32_8 : i32
    %10 = arith.extui %9 : i1 to i32
    %c0_i32_9 = arith.constant 0 : i32
    %11 = arith.cmpi ne, %10, %c0_i32_9 : i32
    scf.if %11 {
      %c0_10 = arith.constant 0 : index
      %c0_11 = arith.constant 0 : index
      %12 = vector.load %arg9[%c0_10, %c0_11] : memref<16x32xf32, #tpu.memory_space<vmem>>, vector<16x32xf32>
      %c0_12 = arith.constant 0 : index
      %c0_13 = arith.constant 0 : index
      %13 = vector.load %arg4[%c0_12, %c0_13] : memref<1x32xf32, #tpu.memory_space<vmem>>, vector<1x32xf32>
      %14 = vector.broadcast %13 : vector<1x32xf32> to vector<16x32xf32>
      %15 = arith.addf %12, %14 : vector<16x32xf32>
      %c0_14 = arith.constant 0 : index
      %c0_15 = arith.constant 0 : index
      %16 = vector.load %arg5[%c0_14, %c0_15] : memref<16x32xf32, #tpu.memory_space<vmem>>, vector<16x32xf32>
      %17 = arith.addf %15, %16 : vector<16x32xf32>
      %cst_16 = arith.constant dense<0.000000e+00> : vector<16xf32>
      %18 = vector.multi_reduction <add>, %17, %cst_16 [1] : vector<16x32xf32> to vector<16xf32>
      %19 = vector.shape_cast %18 : vector<16xf32> to vector<16x1xf32>
      %cst_17 = arith.constant 3.200000e+01 : f32
      %20 = vector.broadcast %cst_17 : f32 to vector<16x1xf32>
      %21 = arith.divf %19, %20 : vector<16x1xf32>
      %22 = vector.broadcast %21 : vector<16x1xf32> to vector<16x32xf32>
      %23 = arith.subf %17, %22 : vector<16x32xf32>
      %24 = arith.mulf %23, %23 : vector<16x32xf32>
      %cst_18 = arith.constant dense<0.000000e+00> : vector<16xf32>
      %25 = vector.multi_reduction <add>, %24, %cst_18 [1] : vector<16x32xf32> to vector<16xf32>
      %26 = vector.shape_cast %25 : vector<16xf32> to vector<16x1xf32>
      %cst_19 = arith.constant 3.200000e+01 : f32
      %27 = vector.broadcast %cst_19 : f32 to vector<16x1xf32>
      %28 = arith.divf %26, %27 : vector<16x1xf32>
      %cst_20 = arith.constant 9.99999996E-13 : f32
      %29 = vector.broadcast %cst_20 : f32 to vector<16x1xf32>
      %30 = arith.addf %28, %29 : vector<16x1xf32>
      %31 = math.rsqrt %30 : vector<16x1xf32>
      %32 = vector.broadcast %31 : vector<16x1xf32> to vector<16x32xf32>
      %33 = arith.mulf %23, %32 : vector<16x32xf32>
      %c0_21 = arith.constant 0 : index
      %c0_22 = arith.constant 0 : index
      %34 = vector.load %arg6[%c0_21, %c0_22] : memref<1x32xf32, #tpu.memory_space<vmem>>, vector<1x32xf32>
      %c0_23 = arith.constant 0 : index
      %c0_24 = arith.constant 0 : index
      %35 = vector.load %arg7[%c0_23, %c0_24] : memref<1x32xf32, #tpu.memory_space<vmem>>, vector<1x32xf32>
      %36 = vector.broadcast %34 : vector<1x32xf32> to vector<16x32xf32>
      %37 = arith.mulf %36, %33 : vector<16x32xf32>
      %38 = vector.broadcast %35 : vector<1x32xf32> to vector<16x32xf32>
      %39 = arith.addf %37, %38 : vector<16x32xf32>
      %c0_25 = arith.constant 0 : index
      %c0_26 = arith.constant 0 : index
      %40 = vector.load %arg8[%c0_25, %c0_26] : memref<16x32xf32, #tpu.memory_space<vmem>>, vector<16x32xf32>
      tpu.vector_store %arg8[%c0_25, %c0_26], %39 {strides = array<i32>} : memref<16x32xf32, #tpu.memory_space<vmem>>, vector<16x32xf32>,
    } else {
    }
    return
  }
  func.func @transform_0(%arg0: i32, %arg1: i32) -> (i32, i32) {
    %c0_i32 = arith.constant 0 : i32
    return %arg0, %arg1 : i32, i32
  }
  func.func @transform_1(%arg0: i32, %arg1: i32) -> (i32, i32) {
    %c0_i32 = arith.constant 0 : i32
    %c0_i32_0 = arith.constant 0 : i32
    return %arg1, %c0_i32 : i32, i32
  }
  func.func @transform_2(%arg0: i32, %arg1: i32) -> (i32, i32) {
    %c0_i32 = arith.constant 0 : i32
    %c0_i32_0 = arith.constant 0 : i32
    %c0_i32_1 = arith.constant 0 : i32
    return %c0_i32, %c0_i32_0 : i32, i32
  }
  func.func @transform_3(%arg0: i32, %arg1: i32) -> (i32, i32) {
    %c0_i32 = arith.constant 0 : i32
    %c0_i32_0 = arith.constant 0 : i32
    return %arg0, %c0_i32 : i32, i32
  }
  func.func @transform_4(%arg0: i32, %arg1: i32) -> (i32, i32) {
    %c0_i32 = arith.constant 0 : i32
    %c0_i32_0 = arith.constant 0 : i32
    %c0_i32_1 = arith.constant 0 : i32
    return %c0_i32, %c0_i32_0 : i32, i32
  }
  func.func @transform_5(%arg0: i32, %arg1: i32) -> (i32, i32) {
    %c0_i32 = arith.constant 0 : i32
    %c0_i32_0 = arith.constant 0 : i32
    %c0_i32_1 = arith.constant 0 : i32
    return %c0_i32, %c0_i32_0 : i32, i32
  }
  func.func @transform_6(%arg0: i32, %arg1: i32) -> (i32, i32) {
    %c0_i32 = arith.constant 0 : i32
    %c0_i32_0 = arith.constant 0 : i32
    return %arg0, %c0_i32 : i32, i32
  }
}

</mosaic_0001>

<llo_original>
// kernel: tpu_custom_call.1
$region0: #{tpu_custom_call.1}
  #allocation0 [shape = 'u32[]', space=smem, size = 0x4, offset = 0x4, fixed_abs, tag = 'smem constant byte address 0x4 - core index']
  #allocation1 [shape = 'u32[144,128]{1,0:T(1,128)}', space=vmem, size = 0x12000, scoped, tag = 'internal scratch']
  #allocation2 [shape = 'f32[16,32]{1,0:T(8,128)}', space=vmem, size = 0x2000, scoped, tag = 'scratch operand']
  %s0 = inlined_call_operand.vmem [shape: f32[16,128], index: 0, kind: input, shape index: {}]
  %s1 = inlined_call_operand.vmem [shape: f32[128,32], index: 1, kind: input, shape index: {}]
  %s2 = inlined_call_operand.vmem [shape: f32[1,32], index: 2, kind: input, shape index: {}]
  %s3 = inlined_call_operand.vmem [shape: f32[16,32], index: 3, kind: input, shape index: {}]
  %s4 = inlined_call_operand.vmem [shape: f32[1,32], index: 4, kind: input, shape index: {}]
  %s5 = inlined_call_operand.vmem [shape: f32[1,32], index: 5, kind: input, shape index: {}]
  %s6 = inlined_call_operand.hbm [shape: f32[16,32], index: 6, kind: output, shape index: {}]
  %s7 = sld [smem:[#allocation0]]
  $region42: #{tpu_custom_call.1} parent=0
    _
  %s9 = ssub.s32 1, %s7
  %s10 = scalar_select 0, %s9, %s7
  $region1: #{tpu_custom_call.1} parent=0
    #allocation3 [shape = 'u8[8192]{0}', space=vmem, size = 0x2000, scoped, tag = 'output window, operand 0, single buffered']
    #allocation4 [shape = 's32[1]{0}', space=sflag, size = 0x4, scoped, tag = 'scoped memory for tpu_custom_call.1']
    %11 = vsyncpa [#allocation4], 0
    // Predicated region
    $region2: #{tpu_custom_call.1} parent=1 // pred_check
      _
    $region3: #{tpu_custom_call.1} parent=1 // pred_check_branch
      %13 = sbr.rel (0) target = $region5
    $region4: #{tpu_custom_call.1} parent=1 // pred_region
      _
    $region5: #{tpu_custom_call.1} parent=1 // pred_fallthru
      _
    // Predicated region
    $region6: #{tpu_custom_call.1} parent=1 // pred_check
      _
    $region7: #{tpu_custom_call.1} parent=1 // pred_check_branch
      %15 = sbr.rel (0) target = $region9
    $region8: #{tpu_custom_call.1} parent=1 // pred_region
      _
    $region9: #{tpu_custom_call.1} parent=1 // pred_fallthru
      _
    // Predicated region
    $region10: #{tpu_custom_call.1} parent=1 // pred_check
      _
    $region11: #{tpu_custom_call.1} parent=1 // pred_check_branch
      %17 = sbr.rel (0) target = $region13
    $region12: #{tpu_custom_call.1} parent=1 // pred_region
      _
    $region13: #{tpu_custom_call.1} parent=1 // pred_fallthru
      _
    // Predicated region
    $region14: #{tpu_custom_call.1} parent=1 // pred_check
      _
    $region15: #{tpu_custom_call.1} parent=1 // pred_check_branch
      %19 = sbr.rel (0) target = $region17
    $region16: #{tpu_custom_call.1} parent=1 // pred_region
      _
    $region17: #{tpu_custom_call.1} parent=1 // pred_fallthru
      _
    // Predicated region
    $region18: #{tpu_custom_call.1} parent=1 // pred_check
      _
    $region19: #{tpu_custom_call.1} parent=1 // pred_check_branch
      %21 = sbr.rel (0) target = $region21
    $region20: #{tpu_custom_call.1} parent=1 // pred_region
      _
    $region21: #{tpu_custom_call.1} parent=1 // pred_fallthru
      _
    // Predicated region
    $region22: #{tpu_custom_call.1} parent=1 // pred_check
      _
    $region23: #{tpu_custom_call.1} parent=1 // pred_check_branch
      %23 = sbr.rel (0) target = $region25
    $region24: #{tpu_custom_call.1} parent=1 // pred_region
      _
    $region25: #{tpu_custom_call.1} parent=1 // pred_fallthru
      _
    %p24 = scmp.eq.s32.totalorder 0, 0
    // Predicated region
    $region26: #{tpu_custom_call.1} parent=1 // pred_check
      %p25 = pneg %p24
    $region27: #{tpu_custom_call.1} parent=1 // pred_check_branch
      %27 = sbr.rel (%p25) target = $region29
    $region28: #{tpu_custom_call.1} parent=1 // pred_region
      %vm28 = vcmask 261120
      %29 = vst.msk [vmem:[#allocation2] sm:$0xff] %vm28, 0.0
      %30 = vst.msk [vmem:[#allocation2 + $0x8] sm:$0xff] %vm28, 0.0
    $region29: #{tpu_custom_call.1} parent=1 // pred_fallthru
      _
    %v31 = vld [vmem:[#allocation2] sm:$0xff]
    %v32 = vld [vmem:[#allocation2 + $0x8] sm:$0xff]
    %v33 = vld [vmem:[%s0] sm:$0xff]
    %v34 = vld [vmem:[%s0 + $0x8] sm:$0xff]
    %v35 = vld [vmem:[%s1] sm:$0xff]
    %v36 = vld [vmem:[%s1 + $0x8] sm:$0xff]
    %v37 = vld [vmem:[%s1 + $0x10] sm:$0xff]
    %v38 = vld [vmem:[%s1 + $0x18] sm:$0xff]
    %v39 = vld [vmem:[%s1 + $0x20] sm:$0xff]
    %v40 = vld [vmem:[%s1 + $0x28] sm:$0xff]
    %v41 = vld [vmem:[%s1 + $0x30] sm:$0xff]
    %v42 = vld [vmem:[%s1 + $0x38] sm:$0xff]
    %v43 = vld [vmem:[%s1 + $0x40] sm:$0xff]
    %v44 = vld [vmem:[%s1 + $0x48] sm:$0xff]
    %v45 = vld [vmem:[%s1 + $0x50] sm:$0xff]
    %v46 = vld [vmem:[%s1 + $0x58] sm:$0xff]
    %v47 = vld [vmem:[%s1 + $0x60] sm:$0xff]
    %v48 = vld [vmem:[%s1 + $0x68] sm:$0xff]
    %v49 = vld [vmem:[%s1 + $0x70] sm:$0xff]
    %v50 = vld [vmem:[%s1 + $0x78] sm:$0xff]
    %51 = vmatprep.subr.mxu0 0.0
    %52 = vmatpush1.msra.mxu0 %v35
    %53 = vmatprep.subr.mxu0 0.0
    %54 = vmatpush1.msra.mxu0 %v36
    %55 = vmatprep.subr.mxu0 0.0
    %56 = vmatpush1.msra.mxu0 %v37
    %57 = vmatprep.subr.mxu0 0.0
    %58 = vmatpush1.msra.mxu0 %v38
    %59 = vmatprep.subr.mxu0 0.0
    %60 = vmatpush1.msra.mxu0 %v39
    %61 = vmatprep.subr.mxu0 0.0
    %62 = vmatpush1.msra.mxu0 %v40
    %63 = vmatprep.subr.mxu0 0.0
    %64 = vmatpush1.msra.mxu0 %v41
    %65 = vmatprep.subr.mxu0 0.0
    %66 = vmatpush1.msra.mxu0 %v42
    %67 = vmatprep.subr.mxu0 0.0
    %68 = vmatpush1.msra.mxu0 %v43
    %69 = vmatprep.subr.mxu0 0.0
    %70 = vmatpush1.msra.mxu0 %v44
    %71 = vmatprep.subr.mxu0 0.0
    %72 = vmatpush1.msra.mxu0 %v45
    %73 = vmatprep.subr.mxu0 0.0
    %74 = vmatpush1.msra.mxu0 %v46
    %75 = vmatprep.subr.mxu0 0.0
    %76 = vmatpush1.msra.mxu0 %v47
    %77 = vmatprep.subr.mxu0 0.0
    %78 = vmatpush1.msra.mxu0 %v48
    %79 = vmatprep.subr.mxu0 0.0
    %80 = vmatpush1.msra.mxu0 %v49
    %81 = vmatprep.subr.mxu0 0.0
    %82 = vmatpush1.msra.mxu0 %v50
    %83 = vmatprep.subr.mxu0 0.0
    %84 = vmatpush1.msra.mxu0 0.0
    %85 = vmatprep.subr.mxu0 0.0
    %86 = vmatpush1.msra.mxu0 0.0
    %87 = vmatprep.subr.mxu0 0.0
    %88 = vmatpush1.msra.mxu0 0.0
    %89 = vmatprep.subr.mxu0 0.0
    %90 = vmatpush1.msra.mxu0 0.0
    %91 = vmatprep.subr.mxu0 0.0
    %92 = vmatpush1.msra.mxu0 0.0
    %93 = vmatprep.subr.mxu0 0.0
    %94 = vmatpush1.msra.mxu0 0.0
    %95 = vmatprep.subr.mxu0 0.0
    %96 = vmatpush1.msra.mxu0 0.0
    %97 = vmatprep.subr.mxu0 0.0
    %98 = vmatpush1.msra.mxu0 0.0
    %99 = vmatprep.subr.mxu0 0.0
    %100 = vmatpush1.msra.mxu0 0.0
    %101 = vmatprep.subr.mxu0 0.0
    %102 = vmatpush1.msra.mxu0 0.0
    %103 = vmatprep.subr.mxu0 0.0
    %104 = vmatpush1.msra.mxu0 0.0
    %105 = vmatprep.subr.mxu0 0.0
    %106 = vmatpush1.msra.mxu0 0.0
    %107 = vmatprep.subr.mxu0 0.0
    %108 = vmatpush1.msra.mxu0 0.0
    %109 = vmatprep.subr.mxu0 0.0
    %110 = vmatpush1.msra.mxu0 0.0
    %111 = vmatprep.subr.mxu0 0.0
    %112 = vmatpush1.msra.mxu0 0.0
    %113 = vmatprep.subr.mxu0 0.0
    %114 = vmatpush1.msra.mxu0 0.0
    %115 = vmatprep.mubr.f32.mxu0 0.0
    %116 = vmatmul.mubr.f32.gmra.mrb[0].mxu0 %v33
    %v117 = vpop.f32.mrb[0].mxu0
    %v118 = vadd.f32 0.0, %v117
    %v119 = vpop.f32.mrb[0].mxu0
    %120 = vmatprep.mubr.f32.mxu0 0.0
    %121 = vmatmul.mubr.f32.gmra.mrb[0].mxu0 %v34
    %v122 = vpop.f32.mrb[0].mxu0
    %v123 = vadd.f32 0.0, %v122
    %v124 = vpop.f32.mrb[0].mxu0
    %125 = vdwg.mxu0
    %v126 = vadd.f32 %v31, %v118
    %v127 = vadd.f32 %v32, %v123
    %vm128 = vcmask 261120
    %129 = vst.msk [vmem:[#allocation2] sm:$0xff] %vm128, %v126
    %130 = vst.msk [vmem:[#allocation2 + $0x8] sm:$0xff] %vm128, %v127
    // Predicated region
    $region30: #{tpu_custom_call.1} parent=1 // pred_check
      %p131 = pneg %p24
    $region31: #{tpu_custom_call.1} parent=1 // pred_check_branch
      %133 = sbr.rel (%p131) target = $region33
    $region32: #{tpu_custom_call.1} parent=1 // pred_region
      %v134 = vld [vmem:[#allocation2] sm:$0xff]
      %v135 = vld [vmem:[#allocation2 + $0x8] sm:$0xff]
      %v136 = vld [vmem:[%s2] sm:$0x1]
      %v138 = vlaneseq
      %v139 = vshrl.u32 %v138, 7
      %v140 = vsub.s32 0, %v139
      %v141 = vrot.slane %v136, %v140
      %v143 = vadd.f32 %v134, %v141
      %v144 = vadd.f32 %v135, %v141
      %v145 = vld [vmem:[%s3] sm:$0xff]
      %v146 = vld [vmem:[%s3 + $0x8] sm:$0xff]
      %v147 = vadd.f32 %v143, %v145
      %v148 = vadd.f32 %v144, %v146
      %v149 = vsel %vm128, %v147, 0.0
      %150 = vadd.xlane.f32.xlu0 %v149
      %v151 = vpop.xlane.xlu0 %150
      %v152 = vsel %vm128, %v148, 0.0
      %153 = vadd.xlane.f32.xlu0 %v152
      %v154 = vpop.xlane.xlu0 %153
      %v155 = vrcp.pop 32.0
      %v156 = vmul.f32 %v151, %v155
      %v157 = vmul.f32 %v154, %v155
      %v158 = vsub.f32 %v147, %v156
      %v159 = vsub.f32 %v148, %v157
      %v160 = vmul.f32 %v158, %v158
      %v161 = vmul.f32 %v159, %v159
      %v162 = vsel %vm128, %v160, 0.0
      %163 = vadd.xlane.f32.xlu0 %v162
      %v164 = vpop.xlane.xlu0 %163
      %v165 = vsel %vm128, %v161, 0.0
      %166 = vadd.xlane.f32.xlu0 %v165
      %v167 = vpop.xlane.xlu0 %166
      %v168 = vmul.f32 %v164, %v155
      %v169 = vmul.f32 %v167, %v155
      %v170 = vadd.f32 %v168, 1e-12
      %v171 = vadd.f32 %v169, 1e-12
      %v172 = vrsqrt.pop %v170
      %v173 = vrsqrt.pop %v171
      %v174 = vmul.f32 %v158, %v172
      %v175 = vmul.f32 %v159, %v173
      %v176 = vld [vmem:[%s4] sm:$0x1]
      %v177 = vld [vmem:[%s5] sm:$0x1]
      %v179 = vlaneseq
      %v180 = vshrl.u32 %v179, 7
      %v181 = vsub.s32 0, %v180
      %v182 = vrot.slane %v176, %v181
      %v184 = vmul.f32 %v182, %v174
      %v185 = vmul.f32 %v182, %v175
      %v187 = vlaneseq
      %v188 = vshrl.u32 %v187, 7
      %v189 = vsub.s32 0, %v188
      %v190 = vrot.slane %v177, %v189
      %v192 = vadd.f32 %v184, %v190
      %v193 = vadd.f32 %v185, %v190
      %194 = vst.msk [vmem:[#allocation3] sm:$0xff] %vm128, %v192
      %195 = vst.msk [vmem:[#allocation3 + $0x8] sm:$0xff] %vm128, %v193
    $region33: #{tpu_custom_call.1} parent=1 // pred_fallthru
      _
    // Predicated region
    $region34: #{tpu_custom_call.1} parent=1 // pred_check
      _
    $region35: #{tpu_custom_call.1} parent=1 // pred_check_branch
      %197 = sbr.rel (0) target = $region37
    $region36: #{tpu_custom_call.1} parent=1 // pred_region
      %s199 = ssub.s32 256, 256
      %200 = vsyncadd [#allocation4], %s199
      %s201 = sshll.u32 [#allocation3], 4
      %s202 = int_to_ptr.vmem [resolvable:$true] %s201
      %207 = dma.vmem_to_hbm [thread:$0]  %s202, 256, %s6, [#allocation4], 128, 128, 8
    $region37: #{tpu_custom_call.1} parent=1 // pred_fallthru
      _
    // Predicated region
    $region38: #{tpu_custom_call.1} parent=1 // pred_check
      _
    $region39: #{tpu_custom_call.1} parent=1 // pred_check_branch
      %209 = sbr.rel (0) target = $region41
    $region40: #{tpu_custom_call.1} parent=1 // pred_region
      %210 = dma.done [#allocation4], 256
    $region41: #{tpu_custom_call.1} parent=1 // pred_fallthru
      _
    %211 = vsyncpa [#allocation4], 1

</llo_original>
